<compile_context>
chip_gen: v5e
topology: v5e:2x2
jax: 0.10.0
libtpu: 0.0.40
codegen_flags: <defaults>
</compile_context>

<pallas_src>
import jax
import jax.numpy as jnp
from jax import lax
from jax.experimental import pallas as pl
from jax.experimental.pallas import tpu as pltpu

NEG_SLOPE = 0.01  # PyTorch nn.LeakyReLU default negative_slope


def _round_up(x, m):
    return ((x + m - 1) // m) * m


def _pad_last(a, n):
    pad = n - a.shape[-1]
    if pad == 0:
        return a
    return jnp.pad(a, [(0, 0)] * (a.ndim - 1) + [(0, pad)])


def _pad_dim0(a, n):
    pad = n - a.shape[0]
    if pad == 0:
        return a
    return jnp.pad(a, [(0, pad)] + [(0, 0)] * (a.ndim - 1))


# ----------------------------------------------------------------------------
# In-kernel helpers
# ----------------------------------------------------------------------------
def _leaky_relu(x):
    return jnp.where(x > 0, x, NEG_SLOPE * x)


def _dotf32(x, w):
    # MXU dot with f32 accumulation; operand cast is a no-op in the f32 config.
    return jnp.dot(x.astype(w.dtype), w, preferred_element_type=jnp.float32)


def _pool_feat(spans, hid):
    """Masked span max-pool + lane-concat -> (TB, 2H) features.

    spans: (TB, 4, 1) int32 = [head_lo, head_hi, tail_lo, tail_hi]
    hid:   (TB, S, H)
    The position iota is built once at (TB, S, 1) and reused for both masks;
    only the final select broadcasts over the H (lane) axis.
    """
    TB, S, H = hid.shape
    pos = lax.broadcasted_iota(jnp.int32, (TB, S, 1), 1)
    sentinel = jnp.asarray(jnp.finfo(hid.dtype).min, hid.dtype)  # finite, no -inf

    def span_max(lo, hi):
        m = (pos >= lo) & (pos < hi)                      # (TB, S, 1)
        return jnp.max(jnp.where(m, hid, sentinel), axis=1)  # (TB, H)

    head_rep = span_max(spans[:, 0:1, :], spans[:, 1:2, :])
    tail_rep = span_max(spans[:, 2:3, :], spans[:, 3:4, :])
    return jnp.concatenate([head_rep, tail_rep], axis=-1)    # (TB, 2H)


def _mlp3(x, w1, b1, w2, b2, w3, b3):
    h = _leaky_relu(_dotf32(x, w1) + b1)
    h = _leaky_relu(_dotf32(h, w2) + b2)
    return _dotf32(h, w3) + b3


# ----------------------------------------------------------------------------
# Fused kernels (one pallas_call per forward branch, pipelined over batch tiles)
# ----------------------------------------------------------------------------
def _similarity_kernel(spans_ref, hid_ref,
                       w1_ref, b1_ref, w2_ref, b2_ref, w3_ref, b3_ref,
                       out_ref):
    feat = _pool_feat(spans_ref[...], hid_ref[...])
    cs = _mlp3(feat, w1_ref[...], b1_ref[...], w2_ref[...], b2_ref[...],
               w3_ref[...], b3_ref[...])
    out_ref[...] = cs.astype(out_ref.dtype)


def _reconstruct_kernel(spans_ref, hid_ref,
                        ew1_ref, eb1_ref, ew2_ref, eb2_ref, ew3_ref, eb3_ref,
                        dw1_ref, db1_ref, dw2_ref, db2_ref, dw3_ref, db3_ref,
                        cs_ref, loss_ref):
    feat = _pool_feat(spans_ref[...], hid_ref[...])
    cs = _mlp3(feat, ew1_ref[...], eb1_ref[...], ew2_ref[...], eb2_ref[...],
               ew3_ref[...], eb3_ref[...])
    cs_ref[...] = cs.astype(cs_ref.dtype)

    rec = _mlp3(cs, dw1_ref[...], db1_ref[...], dw2_ref[...], db2_ref[...],
                dw3_ref[...], db3_ref[...])
    diff = rec - feat.astype(jnp.float32)
    inv = 1.0 / float(feat.shape[-1])
    loss = jnp.sum(diff * diff, axis=-1, keepdims=True) * inv
    loss_ref[...] = loss.astype(loss_ref.dtype)


def _head_kernel(spans_ref, hid_ref, w_ref, b_ref, out_ref):
    feat = _pool_feat(spans_ref[...], hid_ref[...])
    out = _dotf32(feat, w_ref[...]) + b_ref[...]
    out_ref[...] = out.astype(out_ref.dtype)


# ----------------------------------------------------------------------------
# Model wrapper (parameter construction + forward dispatch = plain-JAX glue)
# ----------------------------------------------------------------------------
class ZeroShotModelPallas:
    def __init__(self, key, *, vocab_size, initial_dim, hidden_dim, kmeans_dim,
                 n_seen_classes, n_unlabeled_classes,
                 compute_dtype=jnp.float32, batch_tile=None):
        self.initial_dim = initial_dim
        self.hidden_dim = hidden_dim
        self.kmeans_dim = kmeans_dim
        self.n_seen_classes = n_seen_classes
        self.n_unlabeled_classes = n_unlabeled_classes
        # compute_dtype: set jnp.bfloat16 on v6e/v7x to halve the hidden HBM
        # stream and use the bf16 MXU path (f32 accumulate kept).
        self.compute_dtype = compute_dtype
        if batch_tile is not None and batch_tile % 8 != 0:
            raise ValueError("batch_tile must be a multiple of 8")
        self.batch_tile = batch_tile

        keys = jax.random.split(key, 16)

        def lin(k, fan_in, fan_out):
            kw, kb = jax.random.split(k)
            lim = 1.0 / jnp.sqrt(fan_in)
            w = jax.random.uniform(kw, (fan_in, fan_out), jnp.float32, -lim, lim)
            b = jax.random.uniform(kb, (fan_out,), jnp.float32, -lim, lim)
            return w, b

        # synthetic stand-in for the pretrained encoder (embedding lookup)
        self.embedding = jax.random.normal(
            keys[0], (vocab_size, initial_dim), jnp.float32) * 0.02

        H = initial_dim
        d2 = 2 * H
        # reference-form parameters (used by the pure-JAX correctness check)
        self.similarity_encoder = (lin(keys[1], d2, hidden_dim),
                                   lin(keys[2], hidden_dim, hidden_dim),
                                   lin(keys[3], hidden_dim, kmeans_dim))
        self.similarity_decoder = (lin(keys[4], kmeans_dim, hidden_dim),
                                   lin(keys[5], hidden_dim, hidden_dim),
                                   lin(keys[6], hidden_dim, d2))
        self.labeled_head = lin(keys[7], d2, n_seen_classes)
        self.unlabeled_head = lin(keys[8], d2, n_unlabeled_classes)

        # ---- kernel-form parameters (built once at init) --------------------
        # Final output widths zero-padded to 128-lane multiples so the kernel's
        # output stores are lane-dense; biases pre-shaped to (1, out).
        cd = compute_dtype
        self._k_pad = _round_up(kmeans_dim, 128)
        self._nl_pad = _round_up(n_seen_classes, 128)
        self._nu_pad = _round_up(n_unlabeled_classes, 128)

        (ew1, eb1), (ew2, eb2), (ew3, eb3) = self.similarity_encoder
        self._enc_args = (
            ew1.astype(cd), eb1.reshape(1, -1),
            ew2.astype(cd), eb2.reshape(1, -1),
            _pad_last(ew3, self._k_pad).astype(cd),
            _pad_last(eb3.reshape(1, -1), self._k_pad),
        )
        (dw1, db1), (dw2, db2), (dw3, db3) = self.similarity_decoder
        self._dec_args = (
            _pad_dim0(dw1, self._k_pad).astype(cd), db1.reshape(1, -1),
            dw2.astype(cd), db2.reshape(1, -1),
            dw3.astype(cd), db3.reshape(1, -1),
        )
        lw, lb = self.labeled_head
        self._lab_args = (_pad_last(lw, self._nl_pad).astype(cd),
                          _pad_last(lb.reshape(1, -1), self._nl_pad))
        uw, ub = self.unlabeled_head
        self._unlab_args = (_pad_last(uw, self._nu_pad).astype(cd),
                            _pad_last(ub.reshape(1, -1), self._nu_pad))

    # ------------------------------------------------------------------
    def _pick_batch_tile(self, B, S, H):
        if self.batch_tile is not None:
            tb = self.batch_tile
        else:
            itemsize = jnp.dtype(self.compute_dtype).itemsize
            budget = 24 << 20                      # v7x-safe double-buffer budget
            per_row = 2 * S * H * itemsize
            tb = max(8, min((budget // max(per_row, 1)) // 8 * 8, 512))
        return int(min(tb, _round_up(B, 8)))

    def _vmem_limit(self, TB, S, H):
        itemsize = jnp.dtype(self.compute_dtype).itemsize
        hid_bytes = 2 * TB * S * H * itemsize      # double-buffered hidden tile
        w_bytes = sum(int(a.size) * a.dtype.itemsize
                      for a in (self._enc_args + self._dec_args
                                + self._lab_args + self._unlab_args))
        out_bytes = 4 * TB * max(self._k_pad, self._nl_pad, self._nu_pad) * 4
        est = hid_bytes + w_bytes + out_bytes + (4 << 20)
        return int(min(64 << 20, max(est, 16 << 20)))

    # ------------------------------------------------------------------
    def _prep(self, input_ids, input_mask, head_span, tail_span):
        # TODO(synk): real model is a full transformer; approximated by an
        #             embedding lookup, attention mask unused here.
        del input_mask
        hidden = self.embedding[input_ids].astype(self.compute_dtype)  # (B,S,H)
        B, S, H = hidden.shape
        TB = self._pick_batch_tile(B, S, H)
        B_pad = _round_up(B, TB)

        spans = jnp.concatenate([head_span, tail_span], axis=1).astype(jnp.int32)
        if B_pad != B:
            pad = B_pad - B
            hidden = jnp.pad(hidden, ((0, pad), (0, 0), (0, 0)))
            # padded rows get span (0,1) so their masked max stays finite
            pad_spans = jnp.tile(jnp.array([[0, 1, 0, 1]], jnp.int32), (pad, 1))
            spans = jnp.concatenate([spans, pad_spans], axis=0)
        spans = spans[:, :, None]                                      # (B_pad,4,1)
        return hidden, spans, B, B_pad, TB

    # ------------------------------------------------------------------
    def forward(self, batch, mask=None, msg="similarity"):
        input_ids = batch["token_ids"]
        input_mask = batch["attn_mask"]
        head_span = batch["head_spans"]
        tail_span = batch["tail_spans"]
        if mask is not None:   # eager-only boolean indexing (dynamic shape)
            input_ids = input_ids[mask]
            input_mask = input_mask[mask]
            head_span = head_span[mask]
            tail_span = tail_span[mask]

        hidden, spans, B, B_pad, TB = self._prep(
            input_ids, input_mask, head_span, tail_span)
        S, H = hidden.shape[1], hidden.shape[2]
        grid = (B_pad // TB,)

        spans_spec = pl.BlockSpec((TB, 4, 1), lambda b: (b, 0, 0))
        hid_spec = pl.BlockSpec((TB, S, H), lambda b: (b, 0, 0))

        def wspec(w):
            # full-array block, constant index_map -> stays VMEM-resident
            return pl.BlockSpec(w.shape, lambda b, _nd=w.ndim: (0,) * _nd)

        def out_spec(n):
            return pl.BlockSpec((TB, n), lambda b: (b, 0))

        cp = pltpu.CompilerParams(
            dimension_semantics=("parallel",),
            vmem_limit_bytes=self._vmem_limit(TB, S, H))

        if msg == "similarity":
            args = self._enc_args
            out = pl.pallas_call(
                _similarity_kernel,
                grid_spec=pltpu.PrefetchScalarGridSpec(
                    num_scalar_prefetch=0, grid=grid,
                    in_specs=[spans_spec, hid_spec] + [wspec(a) for a in args],
                    out_specs=out_spec(self._k_pad)),
                out_shape=jax.ShapeDtypeStruct((B_pad, self._k_pad), jnp.float32),
                compiler_params=cp,
            )(spans, hidden, *args)
            return out[:B, :self.kmeans_dim]

        elif msg == "reconstruct":
            args = self._enc_args + self._dec_args
            cs, loss = pl.pallas_call(
                _reconstruct_kernel,
                grid_spec=pltpu.PrefetchScalarGridSpec(
                    num_scalar_prefetch=0, grid=grid,
                    in_specs=[spans_spec, hid_spec] + [wspec(a) for a in args],
                    out_specs=[out_spec(self._k_pad), out_spec(1)]),
                out_shape=(jax.ShapeDtypeStruct((B_pad, self._k_pad), jnp.float32),
                           jax.ShapeDtypeStruct((B_pad, 1), jnp.float32)),
                compiler_params=cp,
            )(spans, hidden, *args)
            return cs[:B, :self.kmeans_dim], loss[:B, 0]

        elif msg in ("labeled", "unlabeled"):
            if msg == "labeled":
                (w, b), n = self._lab_args, self.n_seen_classes
            else:
                (w, b), n = self._unlab_args, self.n_unlabeled_classes
            n_pad = w.shape[1]
            out = pl.pallas_call(
                _head_kernel,
                grid_spec=pltpu.PrefetchScalarGridSpec(
                    num_scalar_prefetch=0, grid=grid,
                    in_specs=[spans_spec, hid_spec, wspec(w), wspec(b)],
                    out_specs=out_spec(n_pad)),
                out_shape=jax.ShapeDtypeStruct((B_pad, n_pad), jnp.float32),
                compiler_params=cp,
            )(spans, hidden, w, b)
            return out[:B, :n]

        else:
            raise NotImplementedError("not implemented!")


# ----------------------------------------------------------------------------
# Pure-JAX reference (for correctness check)
# ----------------------------------------------------------------------------
def _ref_feat(model, batch):
    hidden = model.embedding[batch["token_ids"]]
    B, S, H = hidden.shape
    pos = jnp.arange(S)[None, :, None]
    hs = batch["head_spans"]
    ts = batch["tail_spans"]
    sentinel = jnp.finfo(hidden.dtype).min
    hmask = (pos >= hs[:, 0, None, None]) & (pos < hs[:, 1, None, None])
    tmask = (pos >= ts[:, 0, None, None]) & (pos < ts[:, 1, None, None])
    head_rep = jnp.max(jnp.where(hmask, hidden, sentinel), axis=1)
    tail_rep = jnp.max(jnp.where(tmask, hidden, sentinel), axis=1)
    return jnp.concatenate([head_rep, tail_rep], axis=1)


def _ref_mlp3(x, params):
    (w1, b1), (w2, b2), (w3, b3) = params

    def lrelu(v):
        return jnp.where(v > 0, v, NEG_SLOPE * v)

    h = lrelu(x @ w1 + b1)
    h = lrelu(h @ w2 + b2)
    return h @ w3 + b3


if __name__ == "__main__":
    # small config consistent with the module's forward; B chosen so the batch
    # grid has 2 steps and exercises the padded-tail path (B=10 -> B_pad=16).
    B, S = 10, 16
    VOCAB = 50
    INITIAL_DIM = 32        # model_config.hidden_size
    HIDDEN_DIM = 32         # config.hidden_dim
    KMEANS_DIM = 16         # config.kmeans_dim
    N_SEEN = 5              # config.n_seen_classes
    N_UNLAB = 7             # get_n_classes_unlabeled(config)

    key = jax.random.PRNGKey(0)
    k_model, k_tok, k_hspan, k_tspan = jax.random.split(key, 4)

    model = ZeroShotModelPallas(
        k_model, vocab_size=VOCAB, initial_dim=INITIAL_DIM,
        hidden_dim=HIDDEN_DIM, kmeans_dim=KMEANS_DIM,
        n_seen_classes=N_SEEN, n_unlabeled_classes=N_UNLAB,
        compute_dtype=jnp.float32,   # set jnp.bfloat16 on v6e/v7x for bf16 stream
        batch_tile=8)                # force a 2-step grid at this toy batch

    token_ids = jax.random.randint(k_tok, (B, S), 0, VOCAB, dtype=jnp.int32)
    attn_mask = jnp.ones((B, S), dtype=jnp.int32)
    h_start = jax.random.randint(k_hspan, (B,), 0, S - 3, dtype=jnp.int32)
    t_start = jax.random.randint(k_tspan, (B,), 0, S - 3, dtype=jnp.int32)
    head_spans = jnp.stack([h_start, h_start + 3], axis=1).astype(jnp.int32)
    tail_spans = jnp.stack([t_start, t_start + 2], axis=1).astype(jnp.int32)

    batch = {"token_ids": token_ids, "attn_mask": attn_mask,
             "head_spans": head_spans, "tail_spans": tail_spans}

    # run every msg branch (each is a single batch-tiled pallas_call)
    sim = model.forward(batch, msg="similarity")
    cs, rloss = model.forward(batch, msg="reconstruct")
    logits_l = model.forward(batch, msg="labeled")
    logits_u = model.forward(batch, msg="unlabeled")
    jax.block_until_ready((sim, cs, rloss, logits_l, logits_u))

    assert sim.shape == (B, KMEANS_DIM)
    assert cs.shape == (B, KMEANS_DIM)
    assert rloss.shape == (B,)
    assert logits_l.shape == (B, N_SEEN)
    assert logits_u.shape == (B, N_UNLAB)

    # correctness check against pure-JAX reference
    feat_ref = _ref_feat(model, batch)
    cs_ref = _ref_mlp3(feat_ref, model.similarity_encoder)
    rec_ref = _ref_mlp3(cs_ref, model.similarity_decoder)
    rloss_ref = jnp.mean((rec_ref - feat_ref) ** 2, axis=-1)
    lw, lb = model.labeled_head
    uw, ub = model.unlabeled_head
    logits_l_ref = feat_ref @ lw + lb
    logits_u_ref = feat_ref @ uw + ub

    assert jnp.allclose(sim, cs_ref, atol=1e-5, rtol=1e-5)
    assert jnp.allclose(cs, cs_ref, atol=1e-5, rtol=1e-5)
    assert jnp.allclose(rloss, rloss_ref, atol=1e-5, rtol=1e-5)
    assert jnp.allclose(logits_l, logits_l_ref, atol=1e-5, rtol=1e-5)
    assert jnp.allclose(logits_u, logits_u_ref, atol=1e-5, rtol=1e-5)

    print("KERNEL_OK")
</pallas_src>

<mosaic_0001>
module attributes {stable_mosaic.version = 11 : i64} {
  func.func @_similarity_kernel(%arg0: i32, %arg1: memref<8x4x1xi32, #tpu.memory_space<vmem>>, %arg2: memref<8x16x32xf32, #tpu.memory_space<vmem>>, %arg3: memref<64x32xf32, #tpu.memory_space<vmem>>, %arg4: memref<1x32xf32, #tpu.memory_space<vmem>>, %arg5: memref<32x32xf32, #tpu.memory_space<vmem>>, %arg6: memref<1x32xf32, #tpu.memory_space<vmem>>, %arg7: memref<32x128xf32, #tpu.memory_space<vmem>>, %arg8: memref<1x128xf32, #tpu.memory_space<vmem>>, %arg9: memref<8x128xf32, #tpu.memory_space<vmem>>) attributes {dimension_semantics = [#tpu.dimension_semantics<parallel>], iteration_bounds = array<i64: 2>, scalar_prefetch = 0 : i64, scratch_operands = 0 : i64, tpu.core_type = #tpu.core_type<tc>, window_params = [{transform_indices = @transform_0, window_bounds = array<i64: 8, 4, 1>}, {transform_indices = @transform_1, window_bounds = array<i64: 8, 16, 32>}, {pipeline_mode = #tpu.pipeline_mode<synchronous>, transform_indices = @transform_2, window_bounds = array<i64: 64, 32>}, {pipeline_mode = #tpu.pipeline_mode<synchronous>, transform_indices = @transform_3, window_bounds = array<i64: 1, 32>}, {pipeline_mode = #tpu.pipeline_mode<synchronous>, transform_indices = @transform_4, window_bounds = array<i64: 32, 32>}, {pipeline_mode = #tpu.pipeline_mode<synchronous>, transform_indices = @transform_5, window_bounds = array<i64: 1, 32>}, {pipeline_mode = #tpu.pipeline_mode<synchronous>, transform_indices = @transform_6, window_bounds = array<i64: 32, 128>}, {pipeline_mode = #tpu.pipeline_mode<synchronous>, transform_indices = @transform_7, window_bounds = array<i64: 1, 128>}, {transform_indices = @transform_8, window_bounds = array<i64: 8, 128>}]} {
    %c0 = arith.constant 0 : index
    %c0_0 = arith.constant 0 : index
    %c0_1 = arith.constant 0 : index
    %0 = vector.load %arg1[%c0, %c0_0, %c0_1] : memref<8x4x1xi32, #tpu.memory_space<vmem>>, vector<8x4x1xi32>
    %c0_2 = arith.constant 0 : index
    %c0_3 = arith.constant 0 : index
    %c0_4 = arith.constant 0 : index
    %1 = vector.load %arg2[%c0_2, %c0_3, %c0_4] : memref<8x16x32xf32, #tpu.memory_space<vmem>>, vector<8x16x32xf32>
    %2 = tpu.iota {dimensions = array<i32: 1>} : vector<8x16x1xi32>
    %3 = vector.extract_strided_slice %0 {offsets = [0, 0, 0], sizes = [8, 1, 1], strides = [1, 1, 1]} : vector<8x4x1xi32> to vector<8x1x1xi32>
    %4 = vector.extract_strided_slice %0 {offsets = [0, 1, 0], sizes = [8, 1, 1], strides = [1, 1, 1]} : vector<8x4x1xi32> to vector<8x1x1xi32>
    %5 = vector.broadcast %3 : vector<8x1x1xi32> to vector<8x16x1xi32>
    %6 = arith.cmpi sge, %2, %5 : vector<8x16x1xi32>
    %7 = vector.broadcast %4 : vector<8x1x1xi32> to vector<8x16x1xi32>
    %8 = arith.cmpi slt, %2, %7 : vector<8x16x1xi32>
    %9 = arith.andi %6, %8 : vector<8x16x1xi1>
    %cst = arith.constant -3.40282347E+38 : f32
    %10 = vector.shape_cast %9 : vector<8x16x1xi1> to vector<8x16x1xi1>
    %11 = vector.broadcast %10 : vector<8x16x1xi1> to vector<8x16x32xi1>
    %12 = vector.broadcast %cst : f32 to vector<8x16x32xf32>
    %13 = arith.select %11, %1, %12 : vector<8x16x32xi1>, vector<8x16x32xf32>
    %cst_5 = arith.constant dense<0xFF800000> : vector<8x32xf32>
    %14 = vector.multi_reduction <maximumf>, %13, %cst_5 [1] : vector<8x16x32xf32> to vector<8x32xf32>
    %15 = vector.extract_strided_slice %0 {offsets = [0, 2, 0], sizes = [8, 1, 1], strides = [1, 1, 1]} : vector<8x4x1xi32> to vector<8x1x1xi32>
    %16 = vector.extract_strided_slice %0 {offsets = [0, 3, 0], sizes = [8, 1, 1], strides = [1, 1, 1]} : vector<8x4x1xi32> to vector<8x1x1xi32>
    %17 = vector.broadcast %15 : vector<8x1x1xi32> to vector<8x16x1xi32>
    %18 = arith.cmpi sge, %2, %17 : vector<8x16x1xi32>
    %19 = vector.broadcast %16 : vector<8x1x1xi32> to vector<8x16x1xi32>
    %20 = arith.cmpi slt, %2, %19 : vector<8x16x1xi32>
    %21 = arith.andi %18, %20 : vector<8x16x1xi1>
    %cst_6 = arith.constant -3.40282347E+38 : f32
    %22 = vector.shape_cast %21 : vector<8x16x1xi1> to vector<8x16x1xi1>
    %23 = vector.broadcast %22 : vector<8x16x1xi1> to vector<8x16x32xi1>
    %24 = vector.broadcast %cst_6 : f32 to vector<8x16x32xf32>
    %25 = arith.select %23, %1, %24 : vector<8x16x32xi1>, vector<8x16x32xf32>
    %cst_7 = arith.constant dense<0xFF800000> : vector<8x32xf32>
    %26 = vector.multi_reduction <maximumf>, %25, %cst_7 [1] : vector<8x16x32xf32> to vector<8x32xf32>
    %27 = tpu.concatenate %14, %26 in 1 : vector<8x32xf32>, vector<8x32xf32> -> vector<8x64xf32>
    %c0_8 = arith.constant 0 : index
    %c0_9 = arith.constant 0 : index
    %28 = vector.load %arg3[%c0_8, %c0_9] : memref<64x32xf32, #tpu.memory_space<vmem>>, vector<64x32xf32>
    %c0_10 = arith.constant 0 : index
    %c0_11 = arith.constant 0 : index
    %29 = vector.load %arg4[%c0_10, %c0_11] : memref<1x32xf32, #tpu.memory_space<vmem>>, vector<1x32xf32>
    %c0_12 = arith.constant 0 : index
    %c0_13 = arith.constant 0 : index
    %30 = vector.load %arg5[%c0_12, %c0_13] : memref<32x32xf32, #tpu.memory_space<vmem>>, vector<32x32xf32>
    %c0_14 = arith.constant 0 : index
    %c0_15 = arith.constant 0 : index
    %31 = vector.load %arg6[%c0_14, %c0_15] : memref<1x32xf32, #tpu.memory_space<vmem>>, vector<1x32xf32>
    %c0_16 = arith.constant 0 : index
    %c0_17 = arith.constant 0 : index
    %32 = vector.load %arg7[%c0_16, %c0_17] : memref<32x128xf32, #tpu.memory_space<vmem>>, vector<32x128xf32>
    %c0_18 = arith.constant 0 : index
    %c0_19 = arith.constant 0 : index
    %33 = vector.load %arg8[%c0_18, %c0_19] : memref<1x128xf32, #tpu.memory_space<vmem>>, vector<1x128xf32>
    %cst_20 = arith.constant dense<0.000000e+00> : vector<8x32xf32>
    %34 = tpu.matmul %27, %28, %cst_20 {dimension_numbers = #tpu.dot_dimension_numbers<[1], [0], [0], [1], [0, 0, 1, 1], [], []>} : vector<8x64xf32>, vector<64x32xf32>, vector<8x32xf32> -> vector<8x32xf32>
    %35 = vector.broadcast %29 : vector<1x32xf32> to vector<8x32xf32>
    %36 = arith.addf %34, %35 : vector<8x32xf32>
    %cst_21 = arith.constant 0.000000e+00 : f32
    %37 = vector.broadcast %cst_21 : f32 to vector<8x32xf32>
    %38 = arith.cmpf ogt, %36, %37 : vector<8x32xf32>
    %cst_22 = arith.constant 0.00999999977 : f32
    %39 = vector.broadcast %cst_22 : f32 to vector<8x32xf32>
    %40 = arith.mulf %39, %36 : vector<8x32xf32>
    %41 = arith.select %38, %36, %40 : vector<8x32xi1>, vector<8x32xf32>
    %cst_23 = arith.constant dense<0.000000e+00> : vector<8x32xf32>
    %42 = tpu.matmul %41, %30, %cst_23 {dimension_numbers = #tpu.dot_dimension_numbers<[1], [0], [0], [1], [0, 0, 1, 1], [], []>} : vector<8x32xf32>, vector<32x32xf32>, vector<8x32xf32> -> vector<8x32xf32>
    %43 = vector.broadcast %31 : vector<1x32xf32> to vector<8x32xf32>
    %44 = arith.addf %42, %43 : vector<8x32xf32>
    %cst_24 = arith.constant 0.000000e+00 : f32
    %45 = vector.broadcast %cst_24 : f32 to vector<8x32xf32>
    %46 = arith.cmpf ogt, %44, %45 : vector<8x32xf32>
    %cst_25 = arith.constant 0.00999999977 : f32
    %47 = vector.broadcast %cst_25 : f32 to vector<8x32xf32>
    %48 = arith.mulf %47, %44 : vector<8x32xf32>
    %49 = arith.select %46, %44, %48 : vector<8x32xi1>, vector<8x32xf32>
    %cst_26 = arith.constant dense<0.000000e+00> : vector<8x128xf32>
    %50 = tpu.matmul %49, %32, %cst_26 {dimension_numbers = #tpu.dot_dimension_numbers<[1], [0], [0], [1], [0, 0, 1, 1], [], []>} : vector<8x32xf32>, vector<32x128xf32>, vector<8x128xf32> -> vector<8x128xf32>
    %51 = vector.broadcast %33 : vector<1x128xf32> to vector<8x128xf32>
    %52 = arith.addf %50, %51 : vector<8x128xf32>
    %c0_27 = arith.constant 0 : index
    %c0_28 = arith.constant 0 : index
    %53 = vector.load %arg9[%c0_27, %c0_28] : memref<8x128xf32, #tpu.memory_space<vmem>>, vector<8x128xf32>
    tpu.vector_store %arg9[%c0_27, %c0_28], %52 {strides = array<i32>} : memref<8x128xf32, #tpu.memory_space<vmem>>, vector<8x128xf32>,
    return
  }
  func.func @transform_0(%arg0: i32) -> (i32, i32, i32) {
    %c0_i32 = arith.constant 0 : i32
    %c0_i32_0 = arith.constant 0 : i32
    %c0_i32_1 = arith.constant 0 : i32
    return %arg0, %c0_i32, %c0_i32_0 : i32, i32, i32
  }
  func.func @transform_1(%arg0: i32) -> (i32, i32, i32) {
    %c0_i32 = arith.constant 0 : i32
    %c0_i32_0 = arith.constant 0 : i32
    %c0_i32_1 = arith.constant 0 : i32
    return %arg0, %c0_i32, %c0_i32_0 : i32, i32, i32
  }
  func.func @transform_2(%arg0: i32) -> (i32, i32) {
    %c0_i32 = arith.constant 0 : i32
    %c0_i32_0 = arith.constant 0 : i32
    %c0_i32_1 = arith.constant 0 : i32
    return %c0_i32, %c0_i32_0 : i32, i32
  }
  func.func @transform_3(%arg0: i32) -> (i32, i32) {
    %c0_i32 = arith.constant 0 : i32
    %c0_i32_0 = arith.constant 0 : i32
    %c0_i32_1 = arith.constant 0 : i32
    return %c0_i32, %c0_i32_0 : i32, i32
  }
  func.func @transform_4(%arg0: i32) -> (i32, i32) {
    %c0_i32 = arith.constant 0 : i32
    %c0_i32_0 = arith.constant 0 : i32
    %c0_i32_1 = arith.constant 0 : i32
    return %c0_i32, %c0_i32_0 : i32, i32
  }
  func.func @transform_5(%arg0: i32) -> (i32, i32) {
    %c0_i32 = arith.constant 0 : i32
    %c0_i32_0 = arith.constant 0 : i32
    %c0_i32_1 = arith.constant 0 : i32
    return %c0_i32, %c0_i32_0 : i32, i32
  }
  func.func @transform_6(%arg0: i32) -> (i32, i32) {
    %c0_i32 = arith.constant 0 : i32
    %c0_i32_0 = arith.constant 0 : i32
    %c0_i32_1 = arith.constant 0 : i32
    return %c0_i32, %c0_i32_0 : i32, i32
  }
  func.func @transform_7(%arg0: i32) -> (i32, i32) {
    %c0_i32 = arith.constant 0 : i32
    %c0_i32_0 = arith.constant 0 : i32
    %c0_i32_1 = arith.constant 0 : i32
    return %c0_i32, %c0_i32_0 : i32, i32
  }
  func.func @transform_8(%arg0: i32) -> (i32, i32) {
    %c0_i32 = arith.constant 0 : i32
    %c0_i32_0 = arith.constant 0 : i32
    return %arg0, %c0_i32 : i32, i32
  }
}

</mosaic_0001>

<llo_original>
// kernel: tpu_custom_call.1
$region0: #{tpu_custom_call.1}
  #allocation0 [shape = 'u32[]', space=smem, size = 0x4, offset = 0x4, fixed_abs, tag = 'smem constant byte address 0x4 - core index']
  #allocation1 [shape = 'u32[72,128]{1,0:T(1,128)}', space=vmem, size = 0x9000, scoped, tag = 'internal scratch']
  %s0 = inlined_call_operand.vmem [shape: s32[16,4,1], index: 0, kind: input, shape index: {}]
  %s1 = inlined_call_operand.hbm [shape: f32[16,16,32], index: 1, kind: input, shape index: {}]
  %s2 = inlined_call_operand.vmem [shape: f32[64,32], index: 2, kind: input, shape index: {}]
  %s3 = inlined_call_operand.vmem [shape: f32[1,32], index: 3, kind: input, shape index: {}]
  %s4 = inlined_call_operand.vmem [shape: f32[32,32], index: 4, kind: input, shape index: {}]
  %s5 = inlined_call_operand.vmem [shape: f32[1,32], index: 5, kind: input, shape index: {}]
  %s6 = inlined_call_operand.vmem [shape: f32[32,128], index: 6, kind: input, shape index: {}]
  %s7 = inlined_call_operand.vmem [shape: f32[1,128], index: 7, kind: input, shape index: {}]
  %s8 = inlined_call_operand.hbm [shape: f32[16,128], index: 8, kind: output, shape index: {}]
  %s9 = sld [smem:[#allocation0]]
  $region69: #{tpu_custom_call.1} parent=0
    _
  %s11 = ssub.s32 1, %s9
  %s12 = scalar_select 0, %s11, %s9
  $region1: #{tpu_custom_call.1} parent=0
    #allocation2 [shape = 'u8[131072]{0}', space=vmem, size = 0x20000, scoped, tag = 'input window, operand 1']
    #allocation3 [shape = 's32[2]{0}', space=sflag, size = 0x8, scoped, tag = 'scoped memory for tpu_custom_call.1']
    #allocation4 [shape = 's32[2]{0}', space=sflag, size = 0x8, scoped, tag = 'scoped memory for tpu_custom_call.1']
    #allocation5 [shape = 'u8[8192]{0}', space=vmem, size = 0x2000, scoped, tag = 'output window, operand 0']
    %13 = vsyncpa [#allocation3], 0
    %s14 = scalar_lea.sflag [#allocation3], 1
    %15 = vsyncpa %s14, 0
    %16 = vsyncpa [#allocation4], 0
    %s17 = scalar_lea.sflag [#allocation4], 1
    %18 = vsyncpa %s17, 0
    loop: start=0, step=1, limit=4
    $region2: #{tpu_custom_call.1} parent=1 // loop_pre_header
      _
    $region3: #{tpu_custom_call.1} parent=1 // loop_header
      %s20 = sphi 0, %s24
      %p21 = scmp.ge.s32.totalorder %s20, 4
      %s30 = sphi 0, %s32
      %s33 = sphi 0, %s30
      %s34 = sphi 0, %s33
      %s50 = sphi 0, %s34
      %s56 = sphi 0, %s58
      %s59 = sphi 0, %s56
      %s60 = sphi 0, %s59
      %s76 = sphi 0, %s60
      %s80 = sphi 0, %s80
      %s82 = sphi 0, %s80
      %s83 = sphi 0, %s82
      %s97 = sphi 0, %s83
      %s101 = sphi 0, %s101
      %s103 = sphi 0, %s101
      %s104 = sphi 0, %s103
      %s118 = sphi 0, %s104
      %s122 = sphi 0, %s122
      %s124 = sphi 0, %s122
      %s125 = sphi 0, %s124
      %s139 = sphi 0, %s125
      %s143 = sphi 0, %s143
      %s145 = sphi 0, %s143
      %s146 = sphi 0, %s145
      %s160 = sphi 0, %s146
      %s164 = sphi 0, %s164
      %s166 = sphi 0, %s164
      %s167 = sphi 0, %s166
      %s181 = sphi 0, %s167
      %s185 = sphi 0, %s185
      %s187 = sphi 0, %s185
      %s188 = sphi 0, %s187
      %s202 = sphi 0, %s188
      %s208 = sphi 0, %s210
      %s211 = sphi 0, %s208
      %s212 = sphi 0, %s211
      %s228 = sphi 0, %s212
    $region4: #{tpu_custom_call.1} parent=1 // loop_header_branch
      %23 = sbr.rel (%p21) target = $region8
    $region5: #{tpu_custom_call.1} parent=1 // loop_body
      %s25 = ssub.s32 %s20, 1
      %s26 = ssub.s32 %s20, 2
      %s27 = sadd.s32 %s20, 1
      %s28 = ssub.s32 %s20, %s27
      %p29 = scmp.eq.s32.totalorder %s28, 0
      %s31 = sadd.s32 %s30, 1
      %s32 = scalar_select %p29, %s30, %s31
      %p35 = pneg %p29
      %p36 = scmp.eq.s32.totalorder %s20, 1
      %p37 = por %p35, %p36
      %p38 = scmp.ne.s32.totalorder %s30, %s33
      %p39 = scmp.eq.s32.totalorder %s20, 0
      %p40 = por %p38, %p39
      %p41 = scmp.ne.s32.totalorder %s30, %s33
      %p42 = scmp.eq.s32.totalorder %s25, 1
      %p43 = por %p41, %p42
      %p44 = scmp.ne.s32.totalorder %s33, %s34
      %p45 = scmp.eq.s32.totalorder %s25, 0
      %p46 = por %p44, %p45
      %p47 = scmp.ne.s32.totalorder %s33, %s34
      %p48 = scmp.eq.s32.totalorder %s26, 1
      %p49 = por %p47, %p48
      %p51 = scmp.ne.s32.totalorder %s34, %s50
      %p52 = scmp.eq.s32.totalorder %s26, 0
      %p53 = por %p51, %p52
      %s54 = ssub.s32 %s20, %s27
      %p55 = scmp.eq.s32.totalorder %s54, 0
      %s57 = sadd.s32 %s56, 1
      %s58 = scalar_select %p55, %s56, %s57
      %p61 = pneg %p55
      %p62 = scmp.eq.s32.totalorder %s20, 1
      %p63 = por %p61, %p62
      %p64 = scmp.ne.s32.totalorder %s56, %s59
      %p65 = scmp.eq.s32.totalorder %s20, 0
      %p66 = por %p64, %p65
      %p67 = scmp.ne.s32.totalorder %s56, %s59
      %p68 = scmp.eq.s32.totalorder %s25, 1
      %p69 = por %p67, %p68
      %p70 = scmp.ne.s32.totalorder %s59, %s60
      %p71 = scmp.eq.s32.totalorder %s25, 0
      %p72 = por %p70, %p71
      %p73 = scmp.ne.s32.totalorder %s59, %s60
      %p74 = scmp.eq.s32.totalorder %s26, 1
      %p75 = por %p73, %p74
      %p77 = scmp.ne.s32.totalorder %s60, %s76
      %p78 = scmp.eq.s32.totalorder %s26, 0
      %p79 = por %p77, %p78
      %s81 = sadd.s32 %s80, 1
      %p84 = scmp.eq.s32.totalorder %s20, 1
      %p85 = scmp.ne.s32.totalorder %s80, %s82
      %p86 = scmp.eq.s32.totalorder %s20, 0
      %p87 = por %p85, %p86
      %p88 = scmp.ne.s32.totalorder %s80, %s82
      %p89 = scmp.eq.s32.totalorder %s25, 1
      %p90 = por %p88, %p89
      %p91 = scmp.ne.s32.totalorder %s82, %s83
      %p92 = scmp.eq.s32.totalorder %s25, 0
      %p93 = por %p91, %p92
      %p94 = scmp.ne.s32.totalorder %s82, %s83
      %p95 = scmp.eq.s32.totalorder %s26, 1
      %p96 = por %p94, %p95
      %p98 = scmp.ne.s32.totalorder %s83, %s97
      %p99 = scmp.eq.s32.totalorder %s26, 0
      %p100 = por %p98, %p99
      %s102 = sadd.s32 %s101, 1
      %p105 = scmp.eq.s32.totalorder %s20, 1
      %p106 = scmp.ne.s32.totalorder %s101, %s103
      %p107 = scmp.eq.s32.totalorder %s20, 0
      %p108 = por %p106, %p107
      %p109 = scmp.ne.s32.totalorder %s101, %s103
      %p110 = scmp.eq.s32.totalorder %s25, 1
      %p111 = por %p109, %p110
      %p112 = scmp.ne.s32.totalorder %s103, %s104
      %p113 = scmp.eq.s32.totalorder %s25, 0
      %p114 = por %p112, %p113
      %p115 = scmp.ne.s32.totalorder %s103, %s104
      %p116 = scmp.eq.s32.totalorder %s26, 1
      %p117 = por %p115, %p116
      %p119 = scmp.ne.s32.totalorder %s104, %s118
      %p120 = scmp.eq.s32.totalorder %s26, 0
      %p121 = por %p119, %p120
      %s123 = sadd.s32 %s122, 1
      %p126 = scmp.eq.s32.totalorder %s20, 1
      %p127 = scmp.ne.s32.totalorder %s122, %s124
      %p128 = scmp.eq.s32.totalorder %s20, 0
      %p129 = por %p127, %p128
      %p130 = scmp.ne.s32.totalorder %s122, %s124
      %p131 = scmp.eq.s32.totalorder %s25, 1
      %p132 = por %p130, %p131
      %p133 = scmp.ne.s32.totalorder %s124, %s125
      %p134 = scmp.eq.s32.totalorder %s25, 0
      %p135 = por %p133, %p134
      %p136 = scmp.ne.s32.totalorder %s124, %s125
      %p137 = scmp.eq.s32.totalorder %s26, 1
      %p138 = por %p136, %p137
      %p140 = scmp.ne.s32.totalorder %s125, %s139
      %p141 = scmp.eq.s32.totalorder %s26, 0
      %p142 = por %p140, %p141
      %s144 = sadd.s32 %s143, 1
      %p147 = scmp.eq.s32.totalorder %s20, 1
      %p148 = scmp.ne.s32.totalorder %s143, %s145
      %p149 = scmp.eq.s32.totalorder %s20, 0
      %p150 = por %p148, %p149
      %p151 = scmp.ne.s32.totalorder %s143, %s145
      %p152 = scmp.eq.s32.totalorder %s25, 1
      %p153 = por %p151, %p152
      %p154 = scmp.ne.s32.totalorder %s145, %s146
      %p155 = scmp.eq.s32.totalorder %s25, 0
      %p156 = por %p154, %p155
      %p157 = scmp.ne.s32.totalorder %s145, %s146
      %p158 = scmp.eq.s32.totalorder %s26, 1
      %p159 = por %p157, %p158
      %p161 = scmp.ne.s32.totalorder %s146, %s160
      %p162 = scmp.eq.s32.totalorder %s26, 0
      %p163 = por %p161, %p162
      %s165 = sadd.s32 %s164, 1
      %p168 = scmp.eq.s32.totalorder %s20, 1
      %p169 = scmp.ne.s32.totalorder %s164, %s166
      %p170 = scmp.eq.s32.totalorder %s20, 0
      %p171 = por %p169, %p170
      %p172 = scmp.ne.s32.totalorder %s164, %s166
      %p173 = scmp.eq.s32.totalorder %s25, 1
      %p174 = por %p172, %p173
      %p175 = scmp.ne.s32.totalorder %s166, %s167
      %p176 = scmp.eq.s32.totalorder %s25, 0
      %p177 = por %p175, %p176
      %p178 = scmp.ne.s32.totalorder %s166, %s167
      %p179 = scmp.eq.s32.totalorder %s26, 1
      %p180 = por %p178, %p179
      %p182 = scmp.ne.s32.totalorder %s167, %s181
      %p183 = scmp.eq.s32.totalorder %s26, 0
      %p184 = por %p182, %p183
      %s186 = sadd.s32 %s185, 1
      %p189 = scmp.eq.s32.totalorder %s20, 1
      %p190 = scmp.ne.s32.totalorder %s185, %s187
      %p191 = scmp.eq.s32.totalorder %s20, 0
      %p192 = por %p190, %p191
      %p193 = scmp.ne.s32.totalorder %s185, %s187
      %p194 = scmp.eq.s32.totalorder %s25, 1
      %p195 = por %p193, %p194
      %p196 = scmp.ne.s32.totalorder %s187, %s188
      %p197 = scmp.eq.s32.totalorder %s25, 0
      %p198 = por %p196, %p197
      %p199 = scmp.ne.s32.totalorder %s187, %s188
      %p200 = scmp.eq.s32.totalorder %s26, 1
      %p201 = por %p199, %p200
      %p203 = scmp.ne.s32.totalorder %s188, %s202
      %p204 = scmp.eq.s32.totalorder %s26, 0
      %p205 = por %p203, %p204
      %s206 = ssub.s32 %s20, %s27
      %p207 = scmp.eq.s32.totalorder %s206, 0
      %s209 = sadd.s32 %s208, 1
      %s210 = scalar_select %p207, %s208, %s209
      %p213 = pneg %p207
      %p214 = scmp.eq.s32.totalorder %s20, 1
      %p215 = por %p213, %p214
      %p216 = scmp.ne.s32.totalorder %s208, %s211
      %p217 = scmp.eq.s32.totalorder %s20, 0
      %p218 = por %p216, %p217
      %p219 = scmp.ne.s32.totalorder %s208, %s211
      %p220 = scmp.eq.s32.totalorder %s25, 1
      %p221 = por %p219, %p220
      %p222 = scmp.ne.s32.totalorder %s211, %s212
      %p223 = scmp.eq.s32.totalorder %s25, 0
      %p224 = por %p222, %p223
      %p225 = scmp.ne.s32.totalorder %s211, %s212
      %p226 = scmp.eq.s32.totalorder %s26, 1
      %p227 = por %p225, %p226
      %p229 = scmp.ne.s32.totalorder %s212, %s228
      %p230 = scmp.eq.s32.totalorder %s26, 0
      %p231 = por %p229, %p230
      %p232 = scmp.le.s32.totalorder 1, %s20
      %p233 = scmp.lt.s32.totalorder %s20, 3
      %p234 = pnand %p232, %p233
      %p235 = pneg %p234
      // Predicated region
      $region9: #{tpu_custom_call.1} parent=5 // pred_check
        _
      $region10: #{tpu_custom_call.1} parent=5 // pred_check_branch
        %237 = sbr.rel (%p234) target = $region12
      $region11: #{tpu_custom_call.1} parent=5 // pred_region
        %s238 = ssub.s32 %s20, 1
        // Predicated region
        $region13: #{tpu_custom_call.1} parent=11 // pred_check
          %p239 = pneg %p93
        $region14: #{tpu_custom_call.1} parent=11 // pred_check_branch
          %241 = sbr.rel (%p239) target = $region16
        $region15: #{tpu_custom_call.1} parent=11 // pred_region
          _
        $region16: #{tpu_custom_call.1} parent=11 // pred_fallthru
          _
        // Predicated region
        $region17: #{tpu_custom_call.1} parent=11 // pred_check
          %p242 = pneg %p114
        $region18: #{tpu_custom_call.1} parent=11 // pred_check_branch
          %244 = sbr.rel (%p242) target = $region20
        $region19: #{tpu_custom_call.1} parent=11 // pred_region
          _
        $region20: #{tpu_custom_call.1} parent=11 // pred_fallthru
          _
        // Predicated region
        $region21: #{tpu_custom_call.1} parent=11 // pred_check
          %p245 = pneg %p135
        $region22: #{tpu_custom_call.1} parent=11 // pred_check_branch
          %247 = sbr.rel (%p245) target = $region24
        $region23: #{tpu_custom_call.1} parent=11 // pred_region
          _
        $region24: #{tpu_custom_call.1} parent=11 // pred_fallthru
          _
        // Predicated region
        $region25: #{tpu_custom_call.1} parent=11 // pred_check
          %p248 = pneg %p156
        $region26: #{tpu_custom_call.1} parent=11 // pred_check_branch
          %250 = sbr.rel (%p248) target = $region28
        $region27: #{tpu_custom_call.1} parent=11 // pred_region
          _
        $region28: #{tpu_custom_call.1} parent=11 // pred_fallthru
          _
        // Predicated region
        $region29: #{tpu_custom_call.1} parent=11 // pred_check
          %p251 = pneg %p177
        $region30: #{tpu_custom_call.1} parent=11 // pred_check_branch
          %253 = sbr.rel (%p251) target = $region32
        $region31: #{tpu_custom_call.1} parent=11 // pred_region
          _
        $region32: #{tpu_custom_call.1} parent=11 // pred_fallthru
          _
        // Predicated region
        $region33: #{tpu_custom_call.1} parent=11 // pred_check
          %p254 = pneg %p198
        $region34: #{tpu_custom_call.1} parent=11 // pred_check_branch
          %256 = sbr.rel (%p254) target = $region36
        $region35: #{tpu_custom_call.1} parent=11 // pred_region
          _
        $region36: #{tpu_custom_call.1} parent=11 // pred_fallthru
          _
      $region12: #{tpu_custom_call.1} parent=5 // pred_fallthru
        _
      %p257 = scmp.lt.s32.totalorder %s20, 2
      // Predicated region
      $region37: #{tpu_custom_call.1} parent=5 // pred_check
        %p258 = pneg %p257
      $region38: #{tpu_custom_call.1} parent=5 // pred_check_branch
        %260 = sbr.rel (%p258) target = $region40
      $region39: #{tpu_custom_call.1} parent=5 // pred_region
        // Predicated region
        $region41: #{tpu_custom_call.1} parent=39 // pred_check
          %p261 = pneg %p40
        $region42: #{tpu_custom_call.1} parent=39 // pred_check_branch
          %263 = sbr.rel (%p261) target = $region44
        $region43: #{tpu_custom_call.1} parent=39 // pred_region
          %s264 = smul.u32 8, %s20
          %p265 = scmp.lt.s32.totalorder %s264, 15
          %s266 = scalar_select %p265, %s264, 15
          %s267 = smul.addr %s266, 4
          %s268 = scalar_lea.vmem %s0, %s267
          %s269 = smul.u32 8, %s20
        $region44: #{tpu_custom_call.1} parent=39 // pred_fallthru
          _
        // Predicated region
        $region45: #{tpu_custom_call.1} parent=39 // pred_check
          %p270 = pneg %p66
        $region46: #{tpu_custom_call.1} parent=39 // pred_check_branch
          %272 = sbr.rel (%p270) target = $region48
        $region47: #{tpu_custom_call.1} parent=39 // pred_region
          %s273 = sand.u32 %s56, 1
          %s274 = scalar_lea.sflag [#allocation3], %s273
          %s275 = sand.u32 %s56, 1
          %s276 = smul.addr %s275, 128
          %s277 = scalar_lea.vmem [#allocation2], %s276
          %s278 = smul.u32 8, %s20
          %280 = vsyncadd %s274, 0
          %s281 = smul.addr %s278, 2
          %s282 = smul.addr %s281, 8
          %s283 = scalar_lea.hbm %s1, %s282
          %s284 = sshll.u32 %s283, 4
          %s285 = int_to_ptr.hbm [resolvable:$true] %s284
          %s286 = sshll.u32 %s277, 4
          %s287 = int_to_ptr.vmem [resolvable:$true] %s286
          %292 = dma.hbm_to_vmem [thread:$0]  %s285, 2048, %s287, %s274, 128, 128, 8
        $region48: #{tpu_custom_call.1} parent=39 // pred_fallthru
          _
      $region40: #{tpu_custom_call.1} parent=5 // pred_fallthru
        _
      %p293 = scmp.le.s32.totalorder 1, %s20
      %p294 = scmp.lt.s32.totalorder %s20, 3
      %p295 = pnand %p293, %p294
      %p296 = pneg %p295
      // Predicated region
      $region49: #{tpu_custom_call.1} parent=5 // pred_check
        _
      $region50: #{tpu_custom_call.1} parent=5 // pred_check_branch
        %298 = sbr.rel (%p295) target = $region52
      $region51: #{tpu_custom_call.1} parent=5 // pred_region
        %s299 = ssub.s32 %s20, 1
        %s300 = sand.u32 %s59, 1
        %s301 = scalar_lea.sflag [#allocation3], %s300
        %s302 = sand.u32 %s59, 1
        %s303 = smul.addr %s302, 128
        %s304 = scalar_lea.vmem [#allocation2], %s303
        // Predicated region
        $region53: #{tpu_custom_call.1} parent=51 // pred_check
          %p305 = pneg %p72
        $region54: #{tpu_custom_call.1} parent=51 // pred_check_branch
          %307 = sbr.rel (%p305) target = $region56
        $region55: #{tpu_custom_call.1} parent=51 // pred_region
          %309 = dma.done %s301, 2048
        $region56: #{tpu_custom_call.1} parent=51 // pred_fallthru
          _
        %s310 = smul.u32 8, %s25
        %p311 = scmp.lt.s32.totalorder %s310, 15
        %s312 = scalar_select %p311, %s310, 15
        %s313 = smul.addr %s312, 4
        %s314 = scalar_lea.vmem %s0, %s313
        %p315 = pneg %p46
        %p316 = pneg %p43
        %s317 = sand.u32 %s59, 1
        %s318 = scalar_lea.sflag [#allocation3], %s317
        %s319 = sand.u32 %s59, 1
        %s320 = smul.addr %s319, 128
        %s321 = scalar_lea.vmem [#allocation2], %s320
        %p322 = pneg %p72
        %p323 = pneg %p69
        %p324 = pneg %p93
        %p325 = pneg %p90
        %p326 = pneg %p114
        %p327 = pneg %p111
        %p328 = pneg %p135
        %p329 = pneg %p132
        %p330 = pneg %p156
        %p331 = pneg %p153
        %p332 = pneg %p177
        %p333 = pneg %p174
        %p334 = pneg %p198
        %p335 = pneg %p195
        %p336 = pneg %p224
        %p337 = pneg %p221
        %s338 = sand.u32 %s211, 1
        %s339 = scalar_lea.sflag [#allocation4], %s338
        %s340 = sand.u32 %s211, 1
        %s341 = smul.addr %s340, 8
        %s342 = scalar_lea.vmem [#allocation5], %s341
        %s343 = smul.u32 8, %s25
        %p344 = scmp.lt.s32.totalorder %s343, 15
        %s345 = scalar_select %p344, %s343, 15
        %s346 = smul.addr %s345, 4
        %s347 = scalar_lea.vmem %s0, %s346
        %s348 = smul.u32 8, %s25
        %s349 = smul.u32 8, %s25
        %v350 = vld [vmem:[%s347] sm:$0xf]
        %v351 = vld [vmem:[%s347 + $0x4] sm:$0xf]
        %v352 = vld [vmem:[%s347 + $0x8] sm:$0xf]
        %v353 = vld [vmem:[%s347 + $0xc] sm:$0xf]
        %v354 = vld [vmem:[%s347 + $0x10] sm:$0xf]
        %v355 = vld [vmem:[%s347 + $0x14] sm:$0xf]
        %v356 = vld [vmem:[%s347 + $0x18] sm:$0xf]
        %v357 = vld [vmem:[%s347 + $0x1c] sm:$0xf]
        %v358 = vld [vmem:[%s304] sm:$0xff]
        %v359 = vld [vmem:[%s304 + $0x8] sm:$0xff]
        %v360 = vld [vmem:[%s304 + $0x10] sm:$0xff]
        %v361 = vld [vmem:[%s304 + $0x18] sm:$0xff]
        %v362 = vld [vmem:[%s304 + $0x20] sm:$0xff]
        %v363 = vld [vmem:[%s304 + $0x28] sm:$0xff]
        %v364 = vld [vmem:[%s304 + $0x30] sm:$0xff]
        %v365 = vld [vmem:[%s304 + $0x38] sm:$0xff]
        %v366 = vld [vmem:[%s304 + $0x40] sm:$0xff]
        %v367 = vld [vmem:[%s304 + $0x48] sm:$0xff]
        %v368 = vld [vmem:[%s304 + $0x50] sm:$0xff]
        %v369 = vld [vmem:[%s304 + $0x58] sm:$0xff]
        %v370 = vld [vmem:[%s304 + $0x60] sm:$0xff]
        %v371 = vld [vmem:[%s304 + $0x68] sm:$0xff]
        %v372 = vld [vmem:[%s304 + $0x70] sm:$0xff]
        %v373 = vld [vmem:[%s304 + $0x78] sm:$0xff]
        %v374 = vlaneseq
        %v375 = vshrl.u32 %v374, 7
        %v376 = vadd.s32 %v375, 8
        %v377 = vperm.slane %v350, 0
        %v378 = vperm.slane %v351, 0
        %v379 = vperm.slane %v352, 0
        %v380 = vperm.slane %v353, 0
        %v381 = vperm.slane %v354, 0
        %v382 = vperm.slane %v355, 0
        %v383 = vperm.slane %v356, 0
        %v384 = vperm.slane %v357, 0
        %vm385 = vcmp.ge.s32.totalorder %v375, %v377
        %vm386 = vcmp.ge.s32.totalorder %v376, %v377
        %vm387 = vcmp.ge.s32.totalorder %v375, %v378
        %vm388 = vcmp.ge.s32.totalorder %v376, %v378
        %vm389 = vcmp.ge.s32.totalorder %v375, %v379
        %vm390 = vcmp.ge.s32.totalorder %v376, %v379
        %vm391 = vcmp.ge.s32.totalorder %v375, %v380
        %vm392 = vcmp.ge.s32.totalorder %v376, %v380
        %vm393 = vcmp.ge.s32.totalorder %v375, %v381
        %vm394 = vcmp.ge.s32.totalorder %v376, %v381
        %vm395 = vcmp.ge.s32.totalorder %v375, %v382
        %vm396 = vcmp.ge.s32.totalorder %v376, %v382
        %vm397 = vcmp.ge.s32.totalorder %v375, %v383
        %vm398 = vcmp.ge.s32.totalorder %v376, %v383
        %vm399 = vcmp.ge.s32.totalorder %v375, %v384
        %vm400 = vcmp.ge.s32.totalorder %v376, %v384
        %v401 = vperm.slane %v350, 1
        %v402 = vperm.slane %v351, 1
        %v403 = vperm.slane %v352, 1
        %v404 = vperm.slane %v353, 1
        %v405 = vperm.slane %v354, 1
        %v406 = vperm.slane %v355, 1
        %v407 = vperm.slane %v356, 1
        %v408 = vperm.slane %v357, 1
        %vm409 = vcmp.lt.s32.totalorder %v375, %v401
        %vm410 = vcmp.lt.s32.totalorder %v376, %v401
        %vm411 = vcmp.lt.s32.totalorder %v375, %v402
        %vm412 = vcmp.lt.s32.totalorder %v376, %v402
        %vm413 = vcmp.lt.s32.totalorder %v375, %v403
        %vm414 = vcmp.lt.s32.totalorder %v376, %v403
        %vm415 = vcmp.lt.s32.totalorder %v375, %v404
        %vm416 = vcmp.lt.s32.totalorder %v376, %v404
        %vm417 = vcmp.lt.s32.totalorder %v375, %v405
        %vm418 = vcmp.lt.s32.totalorder %v376, %v405
        %vm419 = vcmp.lt.s32.totalorder %v375, %v406
        %vm420 = vcmp.lt.s32.totalorder %v376, %v406
        %vm421 = vcmp.lt.s32.totalorder %v375, %v407
        %vm422 = vcmp.lt.s32.totalorder %v376, %v407
        %vm423 = vcmp.lt.s32.totalorder %v375, %v408
        %vm424 = vcmp.lt.s32.totalorder %v376, %v408
        %vm425 = vmand %vm385, %vm409
        %vm426 = vmand %vm386, %vm410
        %vm427 = vmand %vm387, %vm411
        %vm428 = vmand %vm388, %vm412
        %vm429 = vmand %vm389, %vm413
        %vm430 = vmand %vm390, %vm414
        %vm431 = vmand %vm391, %vm415
        %vm432 = vmand %vm392, %vm416
        %vm433 = vmand %vm393, %vm417
        %vm434 = vmand %vm394, %vm418
        %vm435 = vmand %vm395, %vm419
        %vm436 = vmand %vm396, %vm420
        %vm437 = vmand %vm397, %vm421
        %vm438 = vmand %vm398, %vm422
        %vm439 = vmand %vm399, %vm423
        %vm440 = vmand %vm400, %vm424
        %v441 = vsel %vm425, 1, 0
        %v442 = vsel %vm426, 1, 0
        %v443 = vsel %vm427, 1, 0
        %v444 = vsel %vm428, 1, 0
        %v445 = vsel %vm429, 1, 0
        %v446 = vsel %vm430, 1, 0
        %v447 = vsel %vm431, 1, 0
        %v448 = vsel %vm432, 1, 0
        %v449 = vsel %vm433, 1, 0
        %v450 = vsel %vm434, 1, 0
        %v451 = vsel %vm435, 1, 0
        %v452 = vsel %vm436, 1, 0
        %v453 = vsel %vm437, 1, 0
        %v454 = vsel %vm438, 1, 0
        %v455 = vsel %vm439, 1, 0
        %v456 = vsel %vm440, 1, 0
        %457 = vset.pattern.permute.xlu0 0
        %458 = vperm.xlu0 %457, %v441
        %v459 = vpop.permute.xlu0 %458
        %460 = vset.pattern.permute.xlu0 0
        %461 = vperm.xlu0 %460, %v442
        %v462 = vpop.permute.xlu0 %461
        %463 = vset.pattern.permute.xlu0 0
        %464 = vperm.xlu0 %463, %v443
        %v465 = vpop.permute.xlu0 %464
        %466 = vset.pattern.permute.xlu0 0
        %467 = vperm.xlu0 %466, %v444
        %v468 = vpop.permute.xlu0 %467
        %469 = vset.pattern.permute.xlu0 0
        %470 = vperm.xlu0 %469, %v445
        %v471 = vpop.permute.xlu0 %470
        %472 = vset.pattern.permute.xlu0 0
        %473 = vperm.xlu0 %472, %v446
        %v474 = vpop.permute.xlu0 %473
        %475 = vset.pattern.permute.xlu0 0
        %476 = vperm.xlu0 %475, %v447
        %v477 = vpop.permute.xlu0 %476
        %478 = vset.pattern.permute.xlu0 0
        %479 = vperm.xlu0 %478, %v448
        %v480 = vpop.permute.xlu0 %479
        %481 = vset.pattern.permute.xlu0 0
        %482 = vperm.xlu0 %481, %v449
        %v483 = vpop.permute.xlu0 %482
        %484 = vset.pattern.permute.xlu0 0
        %485 = vperm.xlu0 %484, %v450
        %v486 = vpop.permute.xlu0 %485
        %487 = vset.pattern.permute.xlu0 0
        %488 = vperm.xlu0 %487, %v451
        %v489 = vpop.permute.xlu0 %488
        %490 = vset.pattern.permute.xlu0 0
        %491 = vperm.xlu0 %490, %v452
        %v492 = vpop.permute.xlu0 %491
        %493 = vset.pattern.permute.xlu0 0
        %494 = vperm.xlu0 %493, %v453
        %v495 = vpop.permute.xlu0 %494
        %496 = vset.pattern.permute.xlu0 0
        %497 = vperm.xlu0 %496, %v454
        %v498 = vpop.permute.xlu0 %497
        %499 = vset.pattern.permute.xlu0 0
        %500 = vperm.xlu0 %499, %v455
        %v501 = vpop.permute.xlu0 %500
        %502 = vset.pattern.permute.xlu0 0
        %503 = vperm.xlu0 %502, %v456
        %v504 = vpop.permute.xlu0 %503
        %vm505 = vcmp.eq.s32.totalorder %v459, 1
        %vm506 = vcmp.eq.s32.totalorder %v462, 1
        %vm507 = vcmp.eq.s32.totalorder %v465, 1
        %vm508 = vcmp.eq.s32.totalorder %v468, 1
        %vm509 = vcmp.eq.s32.totalorder %v471, 1
        %vm510 = vcmp.eq.s32.totalorder %v474, 1
        %vm511 = vcmp.eq.s32.totalorder %v477, 1
        %vm512 = vcmp.eq.s32.totalorder %v480, 1
        %vm513 = vcmp.eq.s32.totalorder %v483, 1
        %vm514 = vcmp.eq.s32.totalorder %v486, 1
        %vm515 = vcmp.eq.s32.totalorder %v489, 1
        %vm516 = vcmp.eq.s32.totalorder %v492, 1
        %vm517 = vcmp.eq.s32.totalorder %v495, 1
        %vm518 = vcmp.eq.s32.totalorder %v498, 1
        %vm519 = vcmp.eq.s32.totalorder %v501, 1
        %vm520 = vcmp.eq.s32.totalorder %v504, 1
        %v521 = vsel %vm505, %v358, -3.4028235e+38
        %v522 = vsel %vm506, %v359, -3.4028235e+38
        %v523 = vsel %vm507, %v360, -3.4028235e+38
        %v524 = vsel %vm508, %v361, -3.4028235e+38
        %v525 = vsel %vm509, %v362, -3.4028235e+38
        %v526 = vsel %vm510, %v363, -3.4028235e+38
        %v527 = vsel %vm511, %v364, -3.4028235e+38
        %v528 = vsel %vm512, %v365, -3.4028235e+38
        %v529 = vsel %vm513, %v366, -3.4028235e+38
        %v530 = vsel %vm514, %v367, -3.4028235e+38
        %v531 = vsel %vm515, %v368, -3.4028235e+38
        %v532 = vsel %vm516, %v369, -3.4028235e+38
        %v533 = vsel %vm517, %v370, -3.4028235e+38
        %v534 = vsel %vm518, %v371, -3.4028235e+38
        %v535 = vsel %vm519, %v372, -3.4028235e+38
        %v536 = vsel %vm520, %v373, -3.4028235e+38
        %vm537 = vcmask 261120
        %v538 = vsel %vm537, %v521, -inf
        %v539 = vsel %vm537, %v522, -inf
        %v540 = vmax.f32 %v538, %v539
        %v541 = vrot.slane %v540, 4
        %v542 = vmax.f32 %v540, %v541
        %v543 = vrot.slane %v542, 2
        %v544 = vmax.f32 %v542, %v543
        %v545 = vrot.slane %v544, 1
        %v546 = vmax.f32 %v544, %v545
        %v547 = vsel %vm537, %v523, -inf
        %v548 = vsel %vm537, %v524, -inf
        %v549 = vmax.f32 %v547, %v548
        %v550 = vrot.slane %v549, 4
        %v551 = vmax.f32 %v549, %v550
        %v552 = vrot.slane %v551, 2
        %v553 = vmax.f32 %v551, %v552
        %v554 = vrot.slane %v553, 1
        %v555 = vmax.f32 %v553, %v554
        %v556 = vsel %vm537, %v525, -inf
        %v557 = vsel %vm537, %v526, -inf
        %v558 = vmax.f32 %v556, %v557
        %v559 = vrot.slane %v558, 4
        %v560 = vmax.f32 %v558, %v559
        %v561 = vrot.slane %v560, 2
        %v562 = vmax.f32 %v560, %v561
        %v563 = vrot.slane %v562, 1
        %v564 = vmax.f32 %v562, %v563
        %v565 = vsel %vm537, %v527, -inf
        %v566 = vsel %vm537, %v528, -inf
        %v567 = vmax.f32 %v565, %v566
        %v568 = vrot.slane %v567, 4
        %v569 = vmax.f32 %v567, %v568
        %v570 = vrot.slane %v569, 2
        %v571 = vmax.f32 %v569, %v570
        %v572 = vrot.slane %v571, 1
        %v573 = vmax.f32 %v571, %v572
        %v574 = vsel %vm537, %v529, -inf
        %v575 = vsel %vm537, %v530, -inf
        %v576 = vmax.f32 %v574, %v575
        %v577 = vrot.slane %v576, 4
        %v578 = vmax.f32 %v576, %v577
        %v579 = vrot.slane %v578, 2
        %v580 = vmax.f32 %v578, %v579
        %v581 = vrot.slane %v580, 1
        %v582 = vmax.f32 %v580, %v581
        %v583 = vsel %vm537, %v531, -inf
        %v584 = vsel %vm537, %v532, -inf
        %v585 = vmax.f32 %v583, %v584
        %v586 = vrot.slane %v585, 4
        %v587 = vmax.f32 %v585, %v586
        %v588 = vrot.slane %v587, 2
        %v589 = vmax.f32 %v587, %v588
        %v590 = vrot.slane %v589, 1
        %v591 = vmax.f32 %v589, %v590
        %v592 = vsel %vm537, %v533, -inf
        %v593 = vsel %vm537, %v534, -inf
        %v594 = vmax.f32 %v592, %v593
        %v595 = vrot.slane %v594, 4
        %v596 = vmax.f32 %v594, %v595
        %v597 = vrot.slane %v596, 2
        %v598 = vmax.f32 %v596, %v597
        %v599 = vrot.slane %v598, 1
        %v600 = vmax.f32 %v598, %v599
        %v601 = vsel %vm537, %v535, -inf
        %v602 = vsel %vm537, %v536, -inf
        %v603 = vmax.f32 %v601, %v602
        %v604 = vrot.slane %v603, 4
        %v605 = vmax.f32 %v603, %v604
        %v606 = vrot.slane %v605, 2
        %v607 = vmax.f32 %v605, %v606
        %v608 = vrot.slane %v607, 1
        %v609 = vmax.f32 %v607, %v608
        %v610 = vperm.slane %v350, 2
        %v611 = vperm.slane %v351, 2
        %v612 = vperm.slane %v352, 2
        %v613 = vperm.slane %v353, 2
        %v614 = vperm.slane %v354, 2
        %v615 = vperm.slane %v355, 2
        %v616 = vperm.slane %v356, 2
        %v617 = vperm.slane %v357, 2
        %vm618 = vcmp.ge.s32.totalorder %v375, %v610
        %vm619 = vcmp.ge.s32.totalorder %v376, %v610
        %vm620 = vcmp.ge.s32.totalorder %v375, %v611
        %vm621 = vcmp.ge.s32.totalorder %v376, %v611
        %vm622 = vcmp.ge.s32.totalorder %v375, %v612
        %vm623 = vcmp.ge.s32.totalorder %v376, %v612
        %vm624 = vcmp.ge.s32.totalorder %v375, %v613
        %vm625 = vcmp.ge.s32.totalorder %v376, %v613
        %vm626 = vcmp.ge.s32.totalorder %v375, %v614
        %vm627 = vcmp.ge.s32.totalorder %v376, %v614
        %vm628 = vcmp.ge.s32.totalorder %v375, %v615
        %vm629 = vcmp.ge.s32.totalorder %v376, %v615
        %vm630 = vcmp.ge.s32.totalorder %v375, %v616
        %vm631 = vcmp.ge.s32.totalorder %v376, %v616
        %vm632 = vcmp.ge.s32.totalorder %v375, %v617
        %vm633 = vcmp.ge.s32.totalorder %v376, %v617
        %v634 = vperm.slane %v350, 3
        %v635 = vperm.slane %v351, 3
        %v636 = vperm.slane %v352, 3
        %v637 = vperm.slane %v353, 3
        %v638 = vperm.slane %v354, 3
        %v639 = vperm.slane %v355, 3
        %v640 = vperm.slane %v356, 3
        %v641 = vperm.slane %v357, 3
        %vm642 = vcmp.lt.s32.totalorder %v375, %v634
        %vm643 = vcmp.lt.s32.totalorder %v376, %v634
        %vm644 = vcmp.lt.s32.totalorder %v375, %v635
        %vm645 = vcmp.lt.s32.totalorder %v376, %v635
        %vm646 = vcmp.lt.s32.totalorder %v375, %v636
        %vm647 = vcmp.lt.s32.totalorder %v376, %v636
        %vm648 = vcmp.lt.s32.totalorder %v375, %v637
        %vm649 = vcmp.lt.s32.totalorder %v376, %v637
        %vm650 = vcmp.lt.s32.totalorder %v375, %v638
        %vm651 = vcmp.lt.s32.totalorder %v376, %v638
        %vm652 = vcmp.lt.s32.totalorder %v375, %v639
        %vm653 = vcmp.lt.s32.totalorder %v376, %v639
        %vm654 = vcmp.lt.s32.totalorder %v375, %v640
        %vm655 = vcmp.lt.s32.totalorder %v376, %v640
        %vm656 = vcmp.lt.s32.totalorder %v375, %v641
        %vm657 = vcmp.lt.s32.totalorder %v376, %v641
        %vm658 = vmand %vm618, %vm642
        %vm659 = vmand %vm619, %vm643
        %vm660 = vmand %vm620, %vm644
        %vm661 = vmand %vm621, %vm645
        %vm662 = vmand %vm622, %vm646
        %vm663 = vmand %vm623, %vm647
        %vm664 = vmand %vm624, %vm648
        %vm665 = vmand %vm625, %vm649
        %vm666 = vmand %vm626, %vm650
        %vm667 = vmand %vm627, %vm651
        %vm668 = vmand %vm628, %vm652
        %vm669 = vmand %vm629, %vm653
        %vm670 = vmand %vm630, %vm654
        %vm671 = vmand %vm631, %vm655
        %vm672 = vmand %vm632, %vm656
        %vm673 = vmand %vm633, %vm657
        %v674 = vsel %vm658, 1, 0
        %v675 = vsel %vm659, 1, 0
        %v676 = vsel %vm660, 1, 0
        %v677 = vsel %vm661, 1, 0
        %v678 = vsel %vm662, 1, 0
        %v679 = vsel %vm663, 1, 0
        %v680 = vsel %vm664, 1, 0
        %v681 = vsel %vm665, 1, 0
        %v682 = vsel %vm666, 1, 0
        %v683 = vsel %vm667, 1, 0
        %v684 = vsel %vm668, 1, 0
        %v685 = vsel %vm669, 1, 0
        %v686 = vsel %vm670, 1, 0
        %v687 = vsel %vm671, 1, 0
        %v688 = vsel %vm672, 1, 0
        %v689 = vsel %vm673, 1, 0
        %690 = vset.pattern.permute.xlu0 0
        %691 = vperm.xlu0 %690, %v674
        %v692 = vpop.permute.xlu0 %691
        %693 = vset.pattern.permute.xlu0 0
        %694 = vperm.xlu0 %693, %v675
        %v695 = vpop.permute.xlu0 %694
        %696 = vset.pattern.permute.xlu0 0
        %697 = vperm.xlu0 %696, %v676
        %v698 = vpop.permute.xlu0 %697
        %699 = vset.pattern.permute.xlu0 0
        %700 = vperm.xlu0 %699, %v677
        %v701 = vpop.permute.xlu0 %700
        %702 = vset.pattern.permute.xlu0 0
        %703 = vperm.xlu0 %702, %v678
        %v704 = vpop.permute.xlu0 %703
        %705 = vset.pattern.permute.xlu0 0
        %706 = vperm.xlu0 %705, %v679
        %v707 = vpop.permute.xlu0 %706
        %708 = vset.pattern.permute.xlu0 0
        %709 = vperm.xlu0 %708, %v680
        %v710 = vpop.permute.xlu0 %709
        %711 = vset.pattern.permute.xlu0 0
        %712 = vperm.xlu0 %711, %v681
        %v713 = vpop.permute.xlu0 %712
        %714 = vset.pattern.permute.xlu0 0
        %715 = vperm.xlu0 %714, %v682
        %v716 = vpop.permute.xlu0 %715
        %717 = vset.pattern.permute.xlu0 0
        %718 = vperm.xlu0 %717, %v683
        %v719 = vpop.permute.xlu0 %718
        %720 = vset.pattern.permute.xlu0 0
        %721 = vperm.xlu0 %720, %v684
        %v722 = vpop.permute.xlu0 %721
        %723 = vset.pattern.permute.xlu0 0
        %724 = vperm.xlu0 %723, %v685
        %v725 = vpop.permute.xlu0 %724
        %726 = vset.pattern.permute.xlu0 0
        %727 = vperm.xlu0 %726, %v686
        %v728 = vpop.permute.xlu0 %727
        %729 = vset.pattern.permute.xlu0 0
        %730 = vperm.xlu0 %729, %v687
        %v731 = vpop.permute.xlu0 %730
        %732 = vset.pattern.permute.xlu0 0
        %733 = vperm.xlu0 %732, %v688
        %v734 = vpop.permute.xlu0 %733
        %735 = vset.pattern.permute.xlu0 0
        %736 = vperm.xlu0 %735, %v689
        %v737 = vpop.permute.xlu0 %736
        %vm738 = vcmp.eq.s32.totalorder %v692, 1
        %vm739 = vcmp.eq.s32.totalorder %v695, 1
        %vm740 = vcmp.eq.s32.totalorder %v698, 1
        %vm741 = vcmp.eq.s32.totalorder %v701, 1
        %vm742 = vcmp.eq.s32.totalorder %v704, 1
        %vm743 = vcmp.eq.s32.totalorder %v707, 1
        %vm744 = vcmp.eq.s32.totalorder %v710, 1
        %vm745 = vcmp.eq.s32.totalorder %v713, 1
        %vm746 = vcmp.eq.s32.totalorder %v716, 1
        %vm747 = vcmp.eq.s32.totalorder %v719, 1
        %vm748 = vcmp.eq.s32.totalorder %v722, 1
        %vm749 = vcmp.eq.s32.totalorder %v725, 1
        %vm750 = vcmp.eq.s32.totalorder %v728, 1
        %vm751 = vcmp.eq.s32.totalorder %v731, 1
        %vm752 = vcmp.eq.s32.totalorder %v734, 1
        %vm753 = vcmp.eq.s32.totalorder %v737, 1
        %v754 = vsel %vm738, %v358, -3.4028235e+38
        %v755 = vsel %vm739, %v359, -3.4028235e+38
        %v756 = vsel %vm740, %v360, -3.4028235e+38
        %v757 = vsel %vm741, %v361, -3.4028235e+38
        %v758 = vsel %vm742, %v362, -3.4028235e+38
        %v759 = vsel %vm743, %v363, -3.4028235e+38
        %v760 = vsel %vm744, %v364, -3.4028235e+38
        %v761 = vsel %vm745, %v365, -3.4028235e+38
        %v762 = vsel %vm746, %v366, -3.4028235e+38
        %v763 = vsel %vm747, %v367, -3.4028235e+38
        %v764 = vsel %vm748, %v368, -3.4028235e+38
        %v765 = vsel %vm749, %v369, -3.4028235e+38
        %v766 = vsel %vm750, %v370, -3.4028235e+38
        %v767 = vsel %vm751, %v371, -3.4028235e+38
        %v768 = vsel %vm752, %v372, -3.4028235e+38
        %v769 = vsel %vm753, %v373, -3.4028235e+38
        %v770 = vsel %vm537, %v754, -inf
        %v771 = vsel %vm537, %v755, -inf
        %v772 = vmax.f32 %v770, %v771
        %v773 = vrot.slane %v772, 4
        %v774 = vmax.f32 %v772, %v773
        %v775 = vrot.slane %v774, 2
        %v776 = vmax.f32 %v774, %v775
        %v777 = vrot.slane %v776, 1
        %v778 = vmax.f32 %v776, %v777
        %v779 = vsel %vm537, %v756, -inf
        %v780 = vsel %vm537, %v757, -inf
        %v781 = vmax.f32 %v779, %v780
        %v782 = vrot.slane %v781, 4
        %v783 = vmax.f32 %v781, %v782
        %v784 = vrot.slane %v783, 2
        %v785 = vmax.f32 %v783, %v784
        %v786 = vrot.slane %v785, 1
        %v787 = vmax.f32 %v785, %v786
        %v788 = vsel %vm537, %v758, -inf
        %v789 = vsel %vm537, %v759, -inf
        %v790 = vmax.f32 %v788, %v789
        %v791 = vrot.slane %v790, 4
        %v792 = vmax.f32 %v790, %v791
        %v793 = vrot.slane %v792, 2
        %v794 = vmax.f32 %v792, %v793
        %v795 = vrot.slane %v794, 1
        %v796 = vmax.f32 %v794, %v795
        %v797 = vsel %vm537, %v760, -inf
        %v798 = vsel %vm537, %v761, -inf
        %v799 = vmax.f32 %v797, %v798
        %v800 = vrot.slane %v799, 4
        %v801 = vmax.f32 %v799, %v800
        %v802 = vrot.slane %v801, 2
        %v803 = vmax.f32 %v801, %v802
        %v804 = vrot.slane %v803, 1
        %v805 = vmax.f32 %v803, %v804
        %v806 = vsel %vm537, %v762, -inf
        %v807 = vsel %vm537, %v763, -inf
        %v808 = vmax.f32 %v806, %v807
        %v809 = vrot.slane %v808, 4
        %v810 = vmax.f32 %v808, %v809
        %v811 = vrot.slane %v810, 2
        %v812 = vmax.f32 %v810, %v811
        %v813 = vrot.slane %v812, 1
        %v814 = vmax.f32 %v812, %v813
        %v815 = vsel %vm537, %v764, -inf
        %v816 = vsel %vm537, %v765, -inf
        %v817 = vmax.f32 %v815, %v816
        %v818 = vrot.slane %v817, 4
        %v819 = vmax.f32 %v817, %v818
        %v820 = vrot.slane %v819, 2
        %v821 = vmax.f32 %v819, %v820
        %v822 = vrot.slane %v821, 1
        %v823 = vmax.f32 %v821, %v822
        %v824 = vsel %vm537, %v766, -inf
        %v825 = vsel %vm537, %v767, -inf
        %v826 = vmax.f32 %v824, %v825
        %v827 = vrot.slane %v826, 4
        %v828 = vmax.f32 %v826, %v827
        %v829 = vrot.slane %v828, 2
        %v830 = vmax.f32 %v828, %v829
        %v831 = vrot.slane %v830, 1
        %v832 = vmax.f32 %v830, %v831
        %v833 = vsel %vm537, %v768, -inf
        %v834 = vsel %vm537, %v769, -inf
        %v835 = vmax.f32 %v833, %v834
        %v836 = vrot.slane %v835, 4
        %v837 = vmax.f32 %v835, %v836
        %v838 = vrot.slane %v837, 2
        %v839 = vmax.f32 %v837, %v838
        %v840 = vrot.slane %v839, 1
        %v841 = vmax.f32 %v839, %v840
        %vm850 = vcmask 1041409
        %v851 = vsel %vm850, %v555, %v546
        %vm852 = vcmask 1042434
        %v853 = vsel %vm852, %v564, %v851
        %vm854 = vcmask 1043459
        %v855 = vsel %vm854, %v573, %v853
        %vm856 = vcmask 1044484
        %v857 = vsel %vm856, %v582, %v855
        %vm858 = vcmask 1045509
        %v859 = vsel %vm858, %v591, %v857
        %vm860 = vcmask 1046534
        %v861 = vsel %vm860, %v600, %v859
        %vm862 = vcmask 1047559
        %v863 = vsel %vm862, %v609, %v861
        %v873 = vsel %vm850, %v787, %v778
        %v874 = vsel %vm852, %v796, %v873
        %v875 = vsel %vm854, %v805, %v874
        %v876 = vsel %vm856, %v814, %v875
        %v877 = vsel %vm858, %v823, %v876
        %v878 = vsel %vm860, %v832, %v877
        %v879 = vsel %vm862, %v841, %v878
        %880 = vrot.lane.b32.xlu0 %v879, 32
        %v881 = vpop.permute.xlu0 %880
        %v883 = vsel %vm537, %v863, %v881
        %v884 = vld [vmem:[%s2] sm:$0xff]
        %v885 = vld [vmem:[%s2 + $0x8] sm:$0xff]
        %v886 = vld [vmem:[%s2 + $0x10] sm:$0xff]
        %v887 = vld [vmem:[%s2 + $0x18] sm:$0xff]
        %v888 = vld [vmem:[%s2 + $0x20] sm:$0xff]
        %v889 = vld [vmem:[%s2 + $0x28] sm:$0xff]
        %v890 = vld [vmem:[%s2 + $0x30] sm:$0xff]
        %v891 = vld [vmem:[%s2 + $0x38] sm:$0xff]
        %v892 = vld [vmem:[%s3] sm:$0x1]
        %v893 = vld [vmem:[%s4] sm:$0xff]
        %v894 = vld [vmem:[%s4 + $0x8] sm:$0xff]
        %v895 = vld [vmem:[%s4 + $0x10] sm:$0xff]
        %v896 = vld [vmem:[%s4 + $0x18] sm:$0xff]
        %v897 = vld [vmem:[%s5] sm:$0x1]
        %v898 = vld [vmem:[%s6] sm:$0xff]
        %v899 = vld [vmem:[%s6 + $0x8] sm:$0xff]
        %v900 = vld [vmem:[%s6 + $0x10] sm:$0xff]
        %v901 = vld [vmem:[%s6 + $0x18] sm:$0xff]
        %v902 = vld [vmem:[%s7] sm:$0x1]
        %v904 = vperm.slane %v892, 0
        %vm906 = vcmask 523264
        %v908 = vsel %vm906, %v883, 0
        %910 = vmatpush.msra.mxu0 0.0
        %911 = vmatpush.msra.mxu0 0.0
        %912 = vmatpush.msra.mxu0 0.0
        %913 = vmatpush.msra.mxu0 0.0
        %914 = vmatpush.msra.mxu0 0.0
        %915 = vmatpush.msra.mxu0 0.0
        %916 = vmatpush.msra.mxu0 0.0
        %917 = vmatpush.msra.mxu0 0.0
        %918 = vmatpush.msra.mxu0 %v891
        %919 = vmatpush.msra.mxu0 %v890
        %920 = vmatpush.msra.mxu0 %v889
        %921 = vmatpush.msra.mxu0 %v888
        %922 = vmatpush.msra.mxu0 %v887
        %923 = vmatpush.msra.mxu0 %v886
        %924 = vmatpush.msra.mxu0 %v885
        %925 = vmatpush.msra.mxu0 %v884
        %926 = vmatmul.f32.gmra.mxu0 %v908
        %v927 = vpop.f32.mrf.mxu0
        %v928 = vadd.f32 %v904, %v927
        %929 = vdwg.mxu0
        %vm930 = vcmp.gt.f32.partialorder %v928, 0.0
        %v931 = vmul.f32 %v928, 0.01
        %v932 = vsel %vm930, %v928, %v931
        %v934 = vperm.slane %v897, 0
        %v937 = vsel %vm537, %v932, 0
        %939 = vmatpush.msra.mxu0 0.0
        %940 = vmatpush.msra.mxu0 0.0
        %941 = vmatpush.msra.mxu0 0.0
        %942 = vmatpush.msra.mxu0 0.0
        %943 = vmatpush.msra.mxu0 0.0
        %944 = vmatpush.msra.mxu0 0.0
        %945 = vmatpush.msra.mxu0 0.0
        %946 = vmatpush.msra.mxu0 0.0
        %947 = vmatpush.msra.mxu0 0.0
        %948 = vmatpush.msra.mxu0 0.0
        %949 = vmatpush.msra.mxu0 0.0
        %950 = vmatpush.msra.mxu0 0.0
        %951 = vmatpush.msra.mxu0 %v896
        %952 = vmatpush.msra.mxu0 %v895
        %953 = vmatpush.msra.mxu0 %v894
        %954 = vmatpush.msra.mxu0 %v893
        %955 = vmatmul.f32.gmra.mxu0 %v937
        %v956 = vpop.f32.mrf.mxu0
        %v957 = vadd.f32 %v934, %v956
        %958 = vdwg.mxu0
        %vm959 = vcmp.gt.f32.partialorder %v957, 0.0
        %v960 = vmul.f32 %v957, 0.01
        %v961 = vsel %vm959, %v957, %v960
        %v963 = vperm.slane %v902, 0
        %v966 = vsel %vm537, %v961, 0
        %968 = vmatpush.msra.mxu0 0.0
        %969 = vmatpush.msra.mxu0 0.0
        %970 = vmatpush.msra.mxu0 0.0
        %971 = vmatpush.msra.mxu0 0.0
        %972 = vmatpush.msra.mxu0 0.0
        %973 = vmatpush.msra.mxu0 0.0
        %974 = vmatpush.msra.mxu0 0.0
        %975 = vmatpush.msra.mxu0 0.0
        %976 = vmatpush.msra.mxu0 0.0
        %977 = vmatpush.msra.mxu0 0.0
        %978 = vmatpush.msra.mxu0 0.0
        %979 = vmatpush.msra.mxu0 0.0
        %980 = vmatpush.msra.mxu0 %v901
        %981 = vmatpush.msra.mxu0 %v900
        %982 = vmatpush.msra.mxu0 %v899
        %983 = vmatpush.msra.mxu0 %v898
        %984 = vmatmul.f32.gmra.mxu0 %v966
        %v985 = vpop.f32.mrf.mxu0
        %v986 = vadd.f32 %v963, %v985
        %987 = vdwg.mxu0
        %988 = vst [vmem:[%s342] sm:$0xff] %v986
        %s989 = sand.u32 %s211, 1
        %s990 = scalar_lea.sflag [#allocation4], %s989
        %s991 = sand.u32 %s211, 1
        %s992 = smul.addr %s991, 8
        %s993 = scalar_lea.vmem [#allocation5], %s992
        // Predicated region
        $region57: #{tpu_custom_call.1} parent=51 // pred_check
          %p994 = pneg %p221
        $region58: #{tpu_custom_call.1} parent=51 // pred_check_branch
          %996 = sbr.rel (%p994) target = $region60
        $region59: #{tpu_custom_call.1} parent=51 // pred_region
          %998 = vsyncadd %s990, 0
          %s999 = smul.addr %s25, 8
          %s1000 = scalar_lea.hbm %s8, %s999
          %s1002 = sshll.u32 %s993, 4
          %s1003 = int_to_ptr.vmem [resolvable:$true] %s1002
          %s1004 = sshll.u32 %s1000, 4
          %s1005 = int_to_ptr.hbm [resolvable:$true] %s1004
          %1007 = dma.vmem_to_hbm [thread:$0]  %s1003, 128, %s1005, %s990
        $region60: #{tpu_custom_call.1} parent=51 // pred_fallthru
          _
      $region52: #{tpu_custom_call.1} parent=5 // pred_fallthru
        _
      %p1008 = scmp.le.s32.totalorder 2, %s20
      // Predicated region
      $region61: #{tpu_custom_call.1} parent=5 // pred_check
        %p1009 = pneg %p1008
      $region62: #{tpu_custom_call.1} parent=5 // pred_check_branch
        %1011 = sbr.rel (%p1009) target = $region64
      $region63: #{tpu_custom_call.1} parent=5 // pred_region
        %s1012 = ssub.s32 %s20, 2
        // Predicated region
        $region65: #{tpu_custom_call.1} parent=63 // pred_check
          %p1013 = pneg %p227
        $region66: #{tpu_custom_call.1} parent=63 // pred_check_branch
          %1015 = sbr.rel (%p1013) target = $region68
        $region67: #{tpu_custom_call.1} parent=63 // pred_region
          %s1016 = sand.u32 %s212, 1
          %s1017 = scalar_lea.sflag [#allocation4], %s1016
          %s1018 = sand.u32 %s212, 1
          %s1019 = smul.addr %s1018, 8
          %s1020 = scalar_lea.vmem [#allocation5], %s1019
          %1022 = dma.done %s1017, 128
        $region68: #{tpu_custom_call.1} parent=63 // pred_fallthru
          _
      $region64: #{tpu_custom_call.1} parent=5 // pred_fallthru
        _
    $region6: #{tpu_custom_call.1} parent=1 // loop_footer
      %s24 = sadd.s32 1, %s20
    $region7: #{tpu_custom_call.1} parent=1 // loop_footer_branch
      %19 = sbr.rel target = $region3
    $region8: #{tpu_custom_call.1} parent=1 // loop_exit
      _
    %1023 = vsyncpa [#allocation3], 1
    %s1024 = scalar_lea.sflag [#allocation3], 1
    %1025 = vsyncpa %s1024, 1
    %1026 = vsyncpa [#allocation4], 1
    %s1027 = scalar_lea.sflag [#allocation4], 1
    %1028 = vsyncpa %s1027, 1

</llo_original>
